<compile_context>
chip_gen: v7x
topology: tpu7x:2x2x1
jax: 0.10.0
libtpu: 0.0.40
codegen_flags: <defaults>
</compile_context>

<pallas_src>
import jax
import jax.numpy as jnp
import numpy as np
from jax import lax
from jax.experimental import pallas as pl
from jax.experimental.pallas import tpu as pltpu


# ----------------------------------------------------------------------------
# helpers
# ----------------------------------------------------------------------------
def _round_up(x: int, m: int) -> int:
    return ((x + m - 1) // m) * m


def _vmem_limit_bytes() -> int:
    """Generation-aware scoped VMEM limit (~48 MiB on v7x, ~96 MiB on v5e/v6e)."""
    try:
        cap = int(pltpu.get_tpu_info().vmem_capacity_bytes)
    except Exception:
        cap = 64 * 1024 * 1024
    return max(32 * 1024 * 1024, min(cap * 3 // 4, 96 * 1024 * 1024))


def _bilinear_matrix(out_size: int, in_size: int) -> jnp.ndarray:
    """align_corners=True bilinear interpolation matrix (out = A @ in), f32."""
    if out_size == 1 or in_size == 1:
        src = jnp.zeros((out_size,), jnp.float32)
    else:
        src = jnp.arange(out_size, dtype=jnp.float32) * (in_size - 1) / (out_size - 1)
    lo = jnp.clip(jnp.floor(src), 0.0, in_size - 1)
    hi = jnp.clip(lo + 1.0, 0.0, in_size - 1)
    w_hi = src - lo
    w_lo = 1.0 - w_hi
    cols = jnp.arange(in_size, dtype=jnp.float32)
    m_lo = (cols[None, :] == lo[:, None]).astype(jnp.float32)
    m_hi = (cols[None, :] == hi[:, None]).astype(jnp.float32)
    return w_lo[:, None] * m_lo + w_hi[:, None] * m_hi


def _pick_channel_tile(n: int, c: int, est_fn, budget: int) -> int:
    """Largest channel-block divisor of c under the VMEM budget, preferring >=2 grid steps."""
    divs = [d for d in range(1, c + 1) if c % d == 0]
    pref = [d for d in divs if est_fn(d) <= budget and n * (c // d) >= 2]
    if pref:
        return max(pref)
    fits = [d for d in divs if est_fn(d) <= budget]
    return max(fits) if fits else 1


def _pick_row_tile(ho: int, wo: int, est_fn, budget: int) -> int:
    """Largest row-strip divisor of ho that keeps the out block lane-aligned and in budget."""
    divs = [d for d in range(1, ho + 1) if ho % d == 0]
    valid = [d for d in divs if (d * wo) % 128 == 0 or d == ho]
    pref = [d for d in valid if est_fn(d) <= budget and ho // d >= 2]
    if pref:
        return max(pref)
    fits = [d for d in valid if est_fn(d) <= budget]
    return max(fits) if fits else min(valid)


def _pick_lane_tile(l: int, bytes_per_lane: int, budget: int):
    """Lane tile (multiple of 128) from a VMEM budget; prefer >=2 grid steps when possible."""
    lpad = _round_up(max(l, 128), 128)
    cap = max(128, (budget // max(1, bytes_per_lane)) // 128 * 128)
    if lpad >= 256:
        lt = min(cap, _round_up(lpad // 2, 128))
    else:
        lt = 128
    lt = min(lt, lpad)
    lpad = _round_up(lpad, lt)
    return lt, lpad


# ----------------------------------------------------------------------------
# Kernel 1: bilinear upsample (align_corners=True), NCHW blocks, bf16 output.
#   per grid step (one image, Ct channels):
#     width : (Ct*H, W) @ (W, Wo)  -> one lane-dense MXU matmul
#     height: per-channel (Ho, H) @ (H, Wo) batched contraction (A_h is tiny).
# ----------------------------------------------------------------------------
def _bilinear_kernel(x_ref, ah_ref, awt_ref, o_ref):
    ct, h, w = x_ref.shape[1], x_ref.shape[2], x_ref.shape[3]
    ho, wo = ah_ref.shape[0], awt_ref.shape[1]

    x = x_ref[0].astype(jnp.bfloat16)                                    # (ct,h,w)
    y = jnp.dot(x.reshape(ct * h, w), awt_ref[...],
                preferred_element_type=jnp.float32)                      # (ct*h, wo)
    y = y.reshape(ct, h, wo).astype(jnp.bfloat16)
    # small (Ho,H) operand broadcast per step; contraction kept batched so the
    # output lands directly in (ct, ho, wo) NCHW order (no output relayout).
    ah_b = jnp.broadcast_to(ah_ref[...], (ct, ho, h))
    up = lax.dot_general(ah_b, y, (((2,), (1,)), ((0,), (0,))),
                         preferred_element_type=jnp.float32)             # (ct,ho,wo)
    o_ref[0] = up.astype(o_ref.dtype)


def bilinear_upsample(x_nchw, scale: int):
    N, C, H, W = x_nchw.shape
    Ho, Wo = H * scale, W * scale
    limit = _vmem_limit_bytes()
    in_b = x_nchw.dtype.itemsize

    def est(ct):
        return (ct * H * W * in_b * 2          # input block, double-buffered
                + ct * Ho * Wo * 2 * 2         # bf16 output block, double-buffered
                + ct * H * Wo * 6              # width-interp f32 + bf16
                + ct * Ho * Wo * 4             # height-interp f32
                + ct * Ho * H * 2)             # broadcast A_h

    Ct = _pick_channel_tile(N, C, est, limit // 2)

    ah = _bilinear_matrix(Ho, H).astype(jnp.bfloat16)                    # (Ho, H)
    awt = _bilinear_matrix(Wo, W).T.astype(jnp.bfloat16)                 # (W, Wo)

    out = pl.pallas_call(
        _bilinear_kernel,
        out_shape=jax.ShapeDtypeStruct((N, C, Ho, Wo), jnp.bfloat16),
        grid=(N, C // Ct),
        in_specs=[
            pl.BlockSpec((1, Ct, H, W), lambda n, c: (n, c, 0, 0)),
            pl.BlockSpec((Ho, H), lambda n, c: (0, 0)),
            pl.BlockSpec((W, Wo), lambda n, c: (0, 0)),
        ],
        out_specs=pl.BlockSpec((1, Ct, Ho, Wo), lambda n, c: (n, c, 0, 0)),
        compiler_params=pltpu.CompilerParams(
            dimension_semantics=("parallel", "parallel"),
            vmem_limit_bytes=limit),
    )(x_nchw, ah, awt)
    return out


# ----------------------------------------------------------------------------
# Kernel 2: fused bilinear upsample + 3x3 conv (pad=1, no bias).
#   grid = (N, Ho/Tr) output-row strips; the conv's zero padding is baked into
#   the per-strip height matrix (zero halo rows) and the width matrix (zero
#   pad columns), so the upsampled activations never exist outside VMEM.
#   The 9 taps are gathered into a (9*Cin, Tr*Wo) VMEM im2col (3 dx-shifted
#   slabs reused across the 3 dy taps) and consumed by ONE deep-K MXU matmul.
# ----------------------------------------------------------------------------
def _upsample_conv_kernel(x_ref, ahs_ref, awt_ref, w_ref, o_ref, col_ref):
    cin, h, w = x_ref.shape[1], x_ref.shape[2], x_ref.shape[3]
    trp = ahs_ref.shape[1]            # Tr + 2 (strip rows + conv halo rows)
    wop = awt_ref.shape[1]            # Wo + 2 (upsampled width + conv pad cols)
    tr, wo = trp - 2, wop - 2

    x = x_ref[0].astype(jnp.bfloat16)                                    # (cin,h,w)
    # width interpolation (+ zero pad columns): one MXU matmul over all rows
    y = jnp.dot(x.reshape(cin * h, w), awt_ref[...],
                preferred_element_type=jnp.float32)                      # (cin*h, wop)
    y = y.reshape(cin, h, wop).astype(jnp.bfloat16)
    # height interpolation for this strip (+ halo / zero-pad rows); the
    # broadcast operand is only (cin, Tr+2, H) bf16 per step.
    ah_b = jnp.broadcast_to(ahs_ref[0], (cin, trp, h))
    up = lax.dot_general(ah_b, y, (((2,), (1,)), ((0,), (0,))),
                         preferred_element_type=jnp.float32)             # (cin,trp,wop)
    up = up.astype(jnp.bfloat16)

    # im2col: 3 dx-shifted slabs, each reused for the 3 dy taps.
    for dx in range(3):
        slab = up[:, :, dx:dx + wo].reshape(cin, trp * wo)               # (cin, trp*wo)
        for dy in range(3):
            k = dy * 3 + dx
            col_ref[k * cin:(k + 1) * cin, :] = slab[:, dy * wo:dy * wo + tr * wo]

    # 3x3 conv as one (Cout, 9*Cin) @ (9*Cin, Tr*Wo) MXU matmul, f32 accumulate
    out = jnp.dot(w_ref[...], col_ref[...], preferred_element_type=jnp.float32)
    o_ref[0] = out.astype(o_ref.dtype)


def upsample_conv(x_nchw, scale: int, conv_weight):
    N, Cin, H, W = x_nchw.shape
    Cout = conv_weight.shape[0]
    Ho, Wo = H * scale, W * scale
    limit = _vmem_limit_bytes()
    in_b = x_nchw.dtype.itemsize

    def est(tr):
        trp, wop = tr + 2, Wo + 2
        return (Cin * H * W * in_b * 2             # input block (re-read per strip)
                + Cin * H * wop * 6                # width-interp f32 + bf16
                + Cout * 9 * Cin * 2 * 2           # weight block
                + Cout * tr * Wo * 2 * 2           # bf16 output block, double-buffered
                + Cin * trp * wop * 6              # up f32 + bf16
                + Cin * trp * H * 2                # broadcast A_h strip
                + 3 * Cin * trp * Wo * 2 * 2       # dx slabs + reshape copies
                + 9 * Cin * tr * Wo * 2            # im2col scratch
                + Cout * tr * Wo * 4)              # f32 matmul result
    Tr = _pick_row_tile(Ho, Wo, est, limit // 2)
    n_strips = Ho // Tr

    # per-strip height matrices with the conv's zero-padding rows baked in
    ah_full = _bilinear_matrix(Ho, H)                                    # (Ho, H)
    zrow = jnp.zeros((1, H), jnp.float32)
    ah_pad = jnp.concatenate([zrow, ah_full, zrow], axis=0)              # (Ho+2, H)
    ahs = jnp.stack([ah_pad[j * Tr:j * Tr + Tr + 2] for j in range(n_strips)],
                    axis=0).astype(jnp.bfloat16)                         # (S, Tr+2, H)
    # width matrix with the conv's zero-padding columns baked in
    awt = _bilinear_matrix(Wo, W).T                                      # (W, Wo)
    zcol = jnp.zeros((W, 1), jnp.float32)
    awt_pad = jnp.concatenate([zcol, awt, zcol], axis=1).astype(jnp.bfloat16)
    # conv weight as (Cout, 9*Cin), rows ordered (dy, dx, cin) to match the im2col
    w2d = jnp.transpose(conv_weight, (0, 2, 3, 1)).reshape(Cout, 9 * Cin)
    w2d = w2d.astype(jnp.bfloat16)

    out = pl.pallas_call(
        _upsample_conv_kernel,
        out_shape=jax.ShapeDtypeStruct((N, Cout, Ho * Wo), jnp.bfloat16),
        grid=(N, n_strips),
        in_specs=[
            pl.BlockSpec((1, Cin, H, W), lambda n, j: (n, 0, 0, 0)),
            pl.BlockSpec((1, Tr + 2, H), lambda n, j: (j, 0, 0)),
            pl.BlockSpec((W, Wo + 2), lambda n, j: (0, 0)),
            pl.BlockSpec((Cout, 9 * Cin), lambda n, j: (0, 0)),
        ],
        out_specs=pl.BlockSpec((1, Cout, Tr * Wo), lambda n, j: (n, 0, j)),
        scratch_shapes=[pltpu.VMEM((9 * Cin, Tr * Wo), jnp.bfloat16)],
        compiler_params=pltpu.CompilerParams(
            dimension_semantics=("parallel", "parallel"),
            vmem_limit_bytes=limit),
    )(x_nchw, ahs, awt_pad, w2d)
    # free metadata reshape (contiguous trailing-dim split), no HBM pass
    return out.reshape(N, Cout, Ho, Wo)


# ----------------------------------------------------------------------------
# Kernel 3: depthwise ConvTranspose2d(k=4, s=2, p=1, groups=C, no bias),
# polyphase form on the ORIGINAL input (no zero-dilated intermediate).
# Planes are packed onto the lane axis; per-(phase,tap) channel weights are
# lane vectors; the 3 column-shifted slabs are hoisted and reused by all taps.
# bf16 over HBM, f32 compute in-kernel (v5e has no bf16 VALU).
# ----------------------------------------------------------------------------
def _dw_convt_kernel(x_ref, w_ref, o_ref):
    # x_ref: (H+2, W+2, Lt) bf16   w_ref: (16, Lt) f32   o_ref: (4, H, W, Lt) bf16
    H, W = o_ref.shape[1], o_ref.shape[2]
    xp = x_ref[...].astype(jnp.float32)
    w = w_ref[...]
    # hoist the 3 column-shifted (sublane) slabs; row shifts are free outer slices
    xs = [xp[:, c0:c0 + W, :] for c0 in range(3)]                        # (H+2, W, Lt)
    for p in range(4):
        py, px = p // 2, p % 2
        terms = []
        for t in range(4):
            a, b = t // 2, t % 2
            r0 = (1 - a) if py == 0 else (1 + a)
            c0 = (1 - b) if px == 0 else (1 + b)
            k = 4 * p + t
            wv = w[k:k + 1][None]                                        # (1,1,Lt)
            terms.append(wv * xs[c0][r0:r0 + H])
        o_ref[p] = (terms[0] + terms[1] + terms[2] + terms[3]).astype(o_ref.dtype)


def conv_transpose_depthwise(x_nchw, weight_c144):
    # weight_c144: (C, 1, 4, 4) — PyTorch ConvTranspose2d weight with groups=C.
    N, C, H, W = x_nchw.shape
    L = N * C

    # TODO(synk): the NCHW <-> lane-packed shuffles below are still host-side XLA
    # passes; they are done at bf16 width to halve their HBM cost.
    xb = x_nchw.astype(jnp.bfloat16)
    xpad = jnp.pad(xb, ((0, 0), (0, 0), (1, 1), (1, 1)))
    xl = jnp.transpose(xpad, (2, 3, 0, 1)).reshape(H + 2, W + 2, L)      # planes->lanes

    # per-(phase, tap) channel weights -> (16, L) lane vectors (f32, tiny)
    wf = weight_c144[:, 0].astype(jnp.float32)                           # (C, 4, 4)
    rows = []
    for p in range(4):
        py, px = p // 2, p % 2
        for t in range(4):
            a, b = t // 2, t % 2
            ky = 1 + 2 * a if py == 0 else 2 - 2 * a
            kx = 1 + 2 * b if px == 0 else 2 - 2 * b
            rows.append(wf[:, ky, kx])
    w16 = jnp.tile(jnp.stack(rows, 0), (1, N))                           # (16, L)

    limit = _vmem_limit_bytes()
    bytes_per_lane = ((H + 2) * (W + 2) * 2 * 2      # bf16 input block, double-buffered
                      + 4 * H * W * 2 * 2            # bf16 output block, double-buffered
                      + (H + 2) * (W + 2) * 4        # f32 copy of the input block
                      + 3 * (H + 2) * W * 4          # 3 hoisted slabs
                      + 4 * H * W * 4)               # per-phase f32 transients
    Lt, Lp = _pick_lane_tile(L, bytes_per_lane, limit // 2)
    if Lp > L:
        xl = jnp.pad(xl, ((0, 0), (0, 0), (0, Lp - L)))
        w16 = jnp.pad(w16, ((0, 0), (0, Lp - L)))

    out = pl.pallas_call(
        _dw_convt_kernel,
        out_shape=jax.ShapeDtypeStruct((4, H, W, Lp), jnp.bfloat16),
        grid=(Lp // Lt,),
        in_specs=[
            pl.BlockSpec((H + 2, W + 2, Lt), lambda i: (0, 0, i)),
            pl.BlockSpec((16, Lt), lambda i: (0, i)),
        ],
        out_specs=pl.BlockSpec((4, H, W, Lt), lambda i: (0, 0, 0, i)),
        compiler_params=pltpu.CompilerParams(
            dimension_semantics=("parallel",),
            vmem_limit_bytes=limit),
    )(xl, w16)

    out = out[..., :L]                                                   # (4,H,W,L)
    out = out.reshape(2, 2, H, W, N, C).transpose(4, 5, 2, 0, 3, 1)
    return out.reshape(N, C, 2 * H, 2 * W)


# ----------------------------------------------------------------------------
# UpsampleModule.forward dispatcher
# ----------------------------------------------------------------------------
def upsample_module(x, size, upsample_type="upsample",
                    conv_weight=None, deconv_weight=None):
    if upsample_type == "ConvTranspose":
        return conv_transpose_depthwise(x, deconv_weight)
    if upsample_type == "upsampleConv":
        return upsample_conv(x, size, conv_weight)
    return bilinear_upsample(x, size)


if __name__ == "__main__":
    key = jax.random.PRNGKey(0)
    k1, k2, k3 = jax.random.split(key, 3)
    N, C, H, W = 2, 4, 16, 16
    size = 2

    x = jax.random.normal(k1, (N, C, H, W), jnp.float32)
    conv_w = 0.1 * jax.random.normal(k2, (C, C, 3, 3), jnp.float32)      # upsampleConv
    deconv_w = 0.1 * jax.random.normal(k3, (C, 1, 4, 4), jnp.float32)    # ConvTranspose

    y_up = upsample_module(x, size, "upsample")
    y_uc = upsample_module(x, size, "upsampleConv", conv_weight=conv_w)
    y_ct = upsample_module(x, size, "ConvTranspose", deconv_weight=deconv_w)
    jax.block_until_ready((y_up, y_uc, y_ct))

    # --- pure-JAX f32 references (kernels use bf16 MXU operands / bf16 outputs) ---
    Ah = _bilinear_matrix(H * size, H)
    Aw = _bilinear_matrix(W * size, W)
    ref_up = jnp.einsum("oh,nchw,pw->ncop", Ah, x, Aw)
    np.testing.assert_allclose(np.asarray(y_up.astype(jnp.float32)),
                               np.asarray(ref_up), rtol=5e-2, atol=5e-2)

    ref_uc = lax.conv_general_dilated(
        ref_up, conv_w, window_strides=(1, 1), padding=((1, 1), (1, 1)),
        dimension_numbers=("NCHW", "OIHW", "NCHW"))
    np.testing.assert_allclose(np.asarray(y_uc.astype(jnp.float32)),
                               np.asarray(ref_uc), rtol=5e-2, atol=5e-2)

    ref_ct = lax.conv_general_dilated(
        x, deconv_w[:, :, ::-1, ::-1], window_strides=(1, 1),
        padding=((2, 2), (2, 2)), lhs_dilation=(2, 2),
        dimension_numbers=("NCHW", "OIHW", "NCHW"), feature_group_count=C)
    np.testing.assert_allclose(np.asarray(y_ct.astype(jnp.float32)),
                               np.asarray(ref_ct), rtol=2e-2, atol=2e-2)

    assert y_up.shape == (N, C, H * size, W * size)
    assert y_uc.shape == (N, C, H * size, W * size)
    assert y_ct.shape == (N, C, 2 * H, 2 * W)
    print("KERNEL_OK")
</pallas_src>

<mosaic_0001>
module attributes {stable_mosaic.version = 11 : i64} {
  func.func @_bilinear_kernel(%arg0: i32, %arg1: i32, %arg2: memref<1x4x16x16xf32, #tpu.memory_space<vmem>>, %arg3: memref<32x16xbf16, #tpu.memory_space<vmem>>, %arg4: memref<16x32xbf16, #tpu.memory_space<vmem>>, %arg5: memref<1x4x32x32xbf16, #tpu.memory_space<vmem>>) attributes {dimension_semantics = [#tpu.dimension_semantics<parallel>, #tpu.dimension_semantics<parallel>], iteration_bounds = array<i64: 2, 1>, scalar_prefetch = 0 : i64, scratch_operands = 0 : i64, tpu.core_type = #tpu.core_type<tc>, window_params = [{transform_indices = @transform_0, window_bounds = array<i64: 1, 4, 16, 16>}, {pipeline_mode = #tpu.pipeline_mode<synchronous>, transform_indices = @transform_1, window_bounds = array<i64: 32, 16>}, {pipeline_mode = #tpu.pipeline_mode<synchronous>, transform_indices = @transform_2, window_bounds = array<i64: 16, 32>}, {transform_indices = @transform_3, window_bounds = array<i64: 1, 4, 32, 32>}]} {
    %c0 = arith.constant 0 : index
    %c0_0 = arith.constant 0 : index
    %c0_1 = arith.constant 0 : index
    %c0_2 = arith.constant 0 : index
    %0 = vector.load %arg2[%c0, %c0_0, %c0_1, %c0_2] : memref<1x4x16x16xf32, #tpu.memory_space<vmem>>, vector<1x4x16x16xf32>
    %1 = vector.shape_cast %0 : vector<1x4x16x16xf32> to vector<4x16x16xf32>
    %2 = arith.truncf %1 : vector<4x16x16xf32> to vector<4x16x16xbf16>
    %3 = vector.shape_cast %2 : vector<4x16x16xbf16> to vector<64x16xbf16>
    %c0_3 = arith.constant 0 : index
    %c0_4 = arith.constant 0 : index
    %4 = vector.load %arg4[%c0_3, %c0_4] : memref<16x32xbf16, #tpu.memory_space<vmem>>, vector<16x32xbf16>
    %cst = arith.constant dense<0.000000e+00> : vector<64x32xf32>
    %5 = tpu.matmul %3, %4, %cst {dimension_numbers = #tpu.dot_dimension_numbers<[1], [0], [0], [1], [0, 0, 1, 1], [], []>} : vector<64x16xbf16>, vector<16x32xbf16>, vector<64x32xf32> -> vector<64x32xf32>
    %6 = vector.shape_cast %5 : vector<64x32xf32> to vector<4x16x32xf32>
    %7 = arith.truncf %6 : vector<4x16x32xf32> to vector<4x16x32xbf16>
    %c0_5 = arith.constant 0 : index
    %c0_6 = arith.constant 0 : index
    %8 = vector.load %arg3[%c0_5, %c0_6] : memref<32x16xbf16, #tpu.memory_space<vmem>>, vector<32x16xbf16>
    %9 = vector.shape_cast %8 : vector<32x16xbf16> to vector<1x32x16xbf16>
    %10 = vector.broadcast %9 : vector<1x32x16xbf16> to vector<4x32x16xbf16>
    %cst_7 = arith.constant dense<0.000000e+00> : vector<4x32x32xf32>
    %11 = tpu.matmul %10, %7, %cst_7 {dimension_numbers = #tpu.dot_dimension_numbers<[2], [1], [1], [2], [0, 0, 0, 1, 1, 2], [0], [0]>} : vector<4x32x16xbf16>, vector<4x16x32xbf16>, vector<4x32x32xf32> -> vector<4x32x32xf32>
    %12 = arith.truncf %11 : vector<4x32x32xf32> to vector<4x32x32xbf16>
    %c0_8 = arith.constant 0 : index
    %c0_9 = arith.constant 0 : index
    %c0_10 = arith.constant 0 : index
    %c0_11 = arith.constant 0 : index
    %13 = vector.load %arg5[%c0_8, %c0_9, %c0_10, %c0_11] : memref<1x4x32x32xbf16, #tpu.memory_space<vmem>>, vector<1x4x32x32xbf16>
    %14 = vector.shape_cast %13 : vector<1x4x32x32xbf16> to vector<4x32x32xbf16>
    %15 = vector.shape_cast %12 : vector<4x32x32xbf16> to vector<1x4x32x32xbf16>
    tpu.vector_store %arg5[%c0_8, %c0_9, %c0_10, %c0_11], %15 {strides = array<i32>} : memref<1x4x32x32xbf16, #tpu.memory_space<vmem>>, vector<1x4x32x32xbf16>,
    return
  }
  func.func @transform_0(%arg0: i32, %arg1: i32) -> (i32, i32, i32, i32) {
    %c0_i32 = arith.constant 0 : i32
    %c0_i32_0 = arith.constant 0 : i32
    %c0_i32_1 = arith.constant 0 : i32
    return %arg0, %arg1, %c0_i32, %c0_i32_0 : i32, i32, i32, i32
  }
  func.func @transform_1(%arg0: i32, %arg1: i32) -> (i32, i32) {
    %c0_i32 = arith.constant 0 : i32
    %c0_i32_0 = arith.constant 0 : i32
    %c0_i32_1 = arith.constant 0 : i32
    return %c0_i32, %c0_i32_0 : i32, i32
  }
  func.func @transform_2(%arg0: i32, %arg1: i32) -> (i32, i32) {
    %c0_i32 = arith.constant 0 : i32
    %c0_i32_0 = arith.constant 0 : i32
    %c0_i32_1 = arith.constant 0 : i32
    return %c0_i32, %c0_i32_0 : i32, i32
  }
  func.func @transform_3(%arg0: i32, %arg1: i32) -> (i32, i32, i32, i32) {
    %c0_i32 = arith.constant 0 : i32
    %c0_i32_0 = arith.constant 0 : i32
    %c0_i32_1 = arith.constant 0 : i32
    return %arg0, %arg1, %c0_i32, %c0_i32_0 : i32, i32, i32, i32
  }
}

</mosaic_0001>

<llo_original>
// kernel: tpu_custom_call.1
$region0: #{tpu_custom_call.1}
  #allocation0 [shape = 'u32[]', space=smem, size = 0x4, offset = 0x4, fixed_abs, tag = 'smem constant byte address 0x4 - core index']
  #allocation1 [shape = 'u32[144,128]{1,0:T(1,128)}', space=vmem, size = 0x12000, scoped, tag = 'internal scratch']
  %s0 = inlined_call_operand.hbm [shape: f32[2,4,16,16], index: 0, kind: input, shape index: {}]
  %s1 = inlined_call_operand.vmem [shape: bf16[32,16], index: 1, kind: input, shape index: {}]
  %s2 = inlined_call_operand.vmem [shape: bf16[16,32], index: 2, kind: input, shape index: {}]
  %s3 = inlined_call_operand.hbm [shape: bf16[2,4,32,32], index: 3, kind: output, shape index: {}]
  %s4 = sld [smem:[#allocation0]]
  $region49: #{tpu_custom_call.1} parent=0
    _
  %s6 = ssub.s32 1, %s4
  %s7 = scalar_select 0, %s6, %s4
  $region1: #{tpu_custom_call.1} parent=0
    #allocation2 [shape = 'u8[65536]{0}', space=vmem, size = 0x10000, scoped, tag = 'input window, operand 0']
    #allocation3 [shape = 's32[2]{0}', space=sflag, size = 0x8, scoped, tag = 'scoped memory for tpu_custom_call.1']
    #allocation4 [shape = 's32[2]{0}', space=sflag, size = 0x8, scoped, tag = 'scoped memory for tpu_custom_call.1']
    #allocation5 [shape = 'u8[65536]{0}', space=vmem, size = 0x10000, scoped, tag = 'output window, operand 0']
    %8 = vsyncpa [#allocation3], 0
    %s9 = scalar_lea.sflag [#allocation3], 1
    %10 = vsyncpa %s9, 0
    %11 = vsyncpa [#allocation4], 0
    %s12 = scalar_lea.sflag [#allocation4], 1
    %13 = vsyncpa %s12, 0
    loop: start=0, step=1, limit=4
    $region2: #{tpu_custom_call.1} parent=1 // loop_pre_header
      _
    $region3: #{tpu_custom_call.1} parent=1 // loop_header
      %s15 = sphi 0, %s19
      %p16 = scmp.ge.s32.totalorder %s15, 4
      %s22 = sphi 0, %s34
      %s23 = sphi 0, %s30
      %s24 = sphi 0, %s22
      %s25 = sphi 0, %s23
      %s26 = sphi 0, %s24
      %s27 = sphi 0, %s25
      %s39 = sphi 0, %s41
      %s42 = sphi 0, %s39
      %s43 = sphi 0, %s42
      %s59 = sphi 0, %s43
      %s63 = sphi 0, %s63
      %s65 = sphi 0, %s63
      %s66 = sphi 0, %s65
      %s80 = sphi 0, %s66
      %s84 = sphi 0, %s84
      %s86 = sphi 0, %s84
      %s87 = sphi 0, %s86
      %s101 = sphi 0, %s87
      %s109 = sphi 0, %s111
      %s112 = sphi 0, %s109
      %s113 = sphi 0, %s112
      %s129 = sphi 0, %s113
    $region4: #{tpu_custom_call.1} parent=1 // loop_header_branch
      %18 = sbr.rel (%p16) target = $region8
    $region5: #{tpu_custom_call.1} parent=1 // loop_body
      %s20 = ssub.s32 %s15, 1
      %s21 = ssub.s32 %s15, 2
      %s28 = sadd.s32 1, %s23
      %p29 = scmp.ge.s32.totalorder %s28, 1
      %s30 = scalar_select %p29, 0, %s28
      %s31 = sadd.s32 1, %s22
      %s32 = scalar_select %p29, %s31, %s22
      %p33 = scmp.ge.s32.totalorder %s32, 2
      %s34 = scalar_select %p33, 0, %s32
      %s35 = ssub.s32 %s22, %s34
      %s36 = ssub.s32 %s23, %s30
      %s37 = sor.u32 %s35, %s36
      %p38 = scmp.eq.s32.totalorder %s37, 0
      %s40 = sadd.s32 %s39, 1
      %s41 = scalar_select %p38, %s39, %s40
      %p44 = pneg %p38
      %p45 = scmp.eq.s32.totalorder %s15, 1
      %p46 = por %p44, %p45
      %p47 = scmp.ne.s32.totalorder %s39, %s42
      %p48 = scmp.eq.s32.totalorder %s15, 0
      %p49 = por %p47, %p48
      %p50 = scmp.ne.s32.totalorder %s39, %s42
      %p51 = scmp.eq.s32.totalorder %s20, 1
      %p52 = por %p50, %p51
      %p53 = scmp.ne.s32.totalorder %s42, %s43
      %p54 = scmp.eq.s32.totalorder %s20, 0
      %p55 = por %p53, %p54
      %p56 = scmp.ne.s32.totalorder %s42, %s43
      %p57 = scmp.eq.s32.totalorder %s21, 1
      %p58 = por %p56, %p57
      %p60 = scmp.ne.s32.totalorder %s43, %s59
      %p61 = scmp.eq.s32.totalorder %s21, 0
      %p62 = por %p60, %p61
      %s64 = sadd.s32 %s63, 1
      %p67 = scmp.eq.s32.totalorder %s15, 1
      %p68 = scmp.ne.s32.totalorder %s63, %s65
      %p69 = scmp.eq.s32.totalorder %s15, 0
      %p70 = por %p68, %p69
      %p71 = scmp.ne.s32.totalorder %s63, %s65
      %p72 = scmp.eq.s32.totalorder %s20, 1
      %p73 = por %p71, %p72
      %p74 = scmp.ne.s32.totalorder %s65, %s66
      %p75 = scmp.eq.s32.totalorder %s20, 0
      %p76 = por %p74, %p75
      %p77 = scmp.ne.s32.totalorder %s65, %s66
      %p78 = scmp.eq.s32.totalorder %s21, 1
      %p79 = por %p77, %p78
      %p81 = scmp.ne.s32.totalorder %s66, %s80
      %p82 = scmp.eq.s32.totalorder %s21, 0
      %p83 = por %p81, %p82
      %s85 = sadd.s32 %s84, 1
      %p88 = scmp.eq.s32.totalorder %s15, 1
      %p89 = scmp.ne.s32.totalorder %s84, %s86
      %p90 = scmp.eq.s32.totalorder %s15, 0
      %p91 = por %p89, %p90
      %p92 = scmp.ne.s32.totalorder %s84, %s86
      %p93 = scmp.eq.s32.totalorder %s20, 1
      %p94 = por %p92, %p93
      %p95 = scmp.ne.s32.totalorder %s86, %s87
      %p96 = scmp.eq.s32.totalorder %s20, 0
      %p97 = por %p95, %p96
      %p98 = scmp.ne.s32.totalorder %s86, %s87
      %p99 = scmp.eq.s32.totalorder %s21, 1
      %p100 = por %p98, %p99
      %p102 = scmp.ne.s32.totalorder %s87, %s101
      %p103 = scmp.eq.s32.totalorder %s21, 0
      %p104 = por %p102, %p103
      %s105 = ssub.s32 %s22, %s34
      %s106 = ssub.s32 %s23, %s30
      %s107 = sor.u32 %s105, %s106
      %p108 = scmp.eq.s32.totalorder %s107, 0
      %s110 = sadd.s32 %s109, 1
      %s111 = scalar_select %p108, %s109, %s110
      %p114 = pneg %p108
      %p115 = scmp.eq.s32.totalorder %s15, 1
      %p116 = por %p114, %p115
      %p117 = scmp.ne.s32.totalorder %s109, %s112
      %p118 = scmp.eq.s32.totalorder %s15, 0
      %p119 = por %p117, %p118
      %p120 = scmp.ne.s32.totalorder %s109, %s112
      %p121 = scmp.eq.s32.totalorder %s20, 1
      %p122 = por %p120, %p121
      %p123 = scmp.ne.s32.totalorder %s112, %s113
      %p124 = scmp.eq.s32.totalorder %s20, 0
      %p125 = por %p123, %p124
      %p126 = scmp.ne.s32.totalorder %s112, %s113
      %p127 = scmp.eq.s32.totalorder %s21, 1
      %p128 = por %p126, %p127
      %p130 = scmp.ne.s32.totalorder %s113, %s129
      %p131 = scmp.eq.s32.totalorder %s21, 0
      %p132 = por %p130, %p131
      %p133 = scmp.le.s32.totalorder 1, %s15
      %p134 = scmp.lt.s32.totalorder %s15, 3
      %p135 = pnand %p133, %p134
      %p136 = pneg %p135
      // Predicated region
      $region9: #{tpu_custom_call.1} parent=5 // pred_check
        _
      $region10: #{tpu_custom_call.1} parent=5 // pred_check_branch
        %138 = sbr.rel (%p135) target = $region12
      $region11: #{tpu_custom_call.1} parent=5 // pred_region
        %s139 = ssub.s32 %s15, 1
        // Predicated region
        $region13: #{tpu_custom_call.1} parent=11 // pred_check
          %p140 = pneg %p76
        $region14: #{tpu_custom_call.1} parent=11 // pred_check_branch
          %142 = sbr.rel (%p140) target = $region16
        $region15: #{tpu_custom_call.1} parent=11 // pred_region
          _
        $region16: #{tpu_custom_call.1} parent=11 // pred_fallthru
          _
        // Predicated region
        $region17: #{tpu_custom_call.1} parent=11 // pred_check
          %p143 = pneg %p97
        $region18: #{tpu_custom_call.1} parent=11 // pred_check_branch
          %145 = sbr.rel (%p143) target = $region20
        $region19: #{tpu_custom_call.1} parent=11 // pred_region
          _
        $region20: #{tpu_custom_call.1} parent=11 // pred_fallthru
          _
      $region12: #{tpu_custom_call.1} parent=5 // pred_fallthru
        _
      %p146 = scmp.lt.s32.totalorder %s15, 2
      // Predicated region
      $region21: #{tpu_custom_call.1} parent=5 // pred_check
        %p147 = pneg %p146
      $region22: #{tpu_custom_call.1} parent=5 // pred_check_branch
        %149 = sbr.rel (%p147) target = $region24
      $region23: #{tpu_custom_call.1} parent=5 // pred_region
        // Predicated region
        $region25: #{tpu_custom_call.1} parent=23 // pred_check
          %p150 = pneg %p49
        $region26: #{tpu_custom_call.1} parent=23 // pred_check_branch
          %152 = sbr.rel (%p150) target = $region28
        $region27: #{tpu_custom_call.1} parent=23 // pred_region
          %s153 = sand.u32 %s39, 1
          %s154 = scalar_lea.sflag [#allocation3], %s153
          %s155 = sand.u32 %s39, 1
          %s156 = smul.addr %s155, 64
          %s157 = scalar_lea.vmem [#allocation2], %s156
          %s158 = smul.u32 4, %s23
          %s160 = ssub.s32 1024, 1024
          %161 = vsyncadd %s154, %s160
          %s162 = smul.addr %s158, 2
          %s163 = smul.addr %s22, 8
          %s164 = sadd.s32 %s162, %s163
          %s165 = smul.addr %s164, 128
          %s166 = scalar_lea.hbm %s0, %s165
          %s167 = sshll.u32 %s157, 4
          %s168 = int_to_ptr.vmem [resolvable:$true] %s167
          %173 = dma.hbm_to_vmem [thread:$0]  %s166, 1024, %s168, %s154, 128, 128, 8
        $region28: #{tpu_custom_call.1} parent=23 // pred_fallthru
          _
      $region24: #{tpu_custom_call.1} parent=5 // pred_fallthru
        _
      %p174 = scmp.le.s32.totalorder 1, %s15
      %p175 = scmp.lt.s32.totalorder %s15, 3
      %p176 = pnand %p174, %p175
      %p177 = pneg %p176
      // Predicated region
      $region29: #{tpu_custom_call.1} parent=5 // pred_check
        _
      $region30: #{tpu_custom_call.1} parent=5 // pred_check_branch
        %179 = sbr.rel (%p176) target = $region32
      $region31: #{tpu_custom_call.1} parent=5 // pred_region
        %s180 = ssub.s32 %s15, 1
        %s181 = sand.u32 %s42, 1
        %s182 = scalar_lea.sflag [#allocation3], %s181
        %s183 = sand.u32 %s42, 1
        %s184 = smul.addr %s183, 64
        %s185 = scalar_lea.vmem [#allocation2], %s184
        // Predicated region
        $region33: #{tpu_custom_call.1} parent=31 // pred_check
          %p186 = pneg %p55
        $region34: #{tpu_custom_call.1} parent=31 // pred_check_branch
          %188 = sbr.rel (%p186) target = $region36
        $region35: #{tpu_custom_call.1} parent=31 // pred_region
          %189 = dma.done %s182, 1024
        $region36: #{tpu_custom_call.1} parent=31 // pred_fallthru
          _
        %s190 = sand.u32 %s42, 1
        %s191 = scalar_lea.sflag [#allocation3], %s190
        %s192 = sand.u32 %s42, 1
        %s193 = smul.addr %s192, 64
        %s194 = scalar_lea.vmem [#allocation2], %s193
        %p195 = pneg %p55
        %p196 = pneg %p52
        %p197 = pneg %p76
        %p198 = pneg %p73
        %p199 = pneg %p97
        %p200 = pneg %p94
        %p201 = pneg %p125
        %p202 = pneg %p122
        %s203 = sand.u32 %s112, 1
        %s204 = scalar_lea.sflag [#allocation4], %s203
        %s205 = sand.u32 %s112, 1
        %s206 = smul.addr %s205, 64
        %s207 = scalar_lea.vmem [#allocation5], %s206
        %s208 = smul.u32 4, %s25
        %s209 = smul.u32 4, %s25
        %v211 = vld [vmem:[%s185] sm:$0xff]
        %v212 = vld [vmem:[%s185 + $0x8] sm:$0xff]
        %v213 = vld [vmem:[%s185 + $0x10] sm:$0xff]
        %v214 = vld [vmem:[%s185 + $0x18] sm:$0xff]
        %v215 = vld [vmem:[%s185 + $0x20] sm:$0xff]
        %v216 = vld [vmem:[%s185 + $0x28] sm:$0xff]
        %v217 = vld [vmem:[%s185 + $0x30] sm:$0xff]
        %v218 = vld [vmem:[%s185 + $0x38] sm:$0xff]
        %v219 = vpack.c.bf16 %v212, %v211
        %v220 = vpack.c.bf16 %v214, %v213
        %v221 = vpack.c.bf16 %v216, %v215
        %v222 = vpack.c.bf16 %v218, %v217
        %v223 = vld [vmem:[%s2] sm:$0xf]
        %v224 = vld [vmem:[%s2 + $0x4] sm:$0xf]
        %v227 = vunpack.c.l.b16 %v223
        %v228 = vunpack.c.l.b16 %v224
        %v229 = vpack.c.b16 %v228, %v227
        %vm231 = vcmask 130048
        %v233 = vsel %vm231, %v219, 0
        %v236 = vsel %vm231, %v220, 0
        %v239 = vsel %vm231, %v221, 0
        %v242 = vsel %vm231, %v222, 0
        %244 = vmatprep.subr.bf16.mxu0 0
        %245 = vmatpush1.bf16.msra.mxu0 %v229
        %246 = vmatprep.subr.bf16.mxu0 0
        %247 = vmatpush1.bf16.msra.mxu0 0
        %248 = vmatprep.subr.bf16.mxu0 0
        %249 = vmatpush1.bf16.msra.mxu0 0
        %250 = vmatprep.subr.bf16.mxu0 0
        %251 = vmatpush1.bf16.msra.mxu0 0
        %252 = vmatprep.subr.bf16.mxu0 0
        %253 = vmatpush1.bf16.msra.mxu0 0
        %254 = vmatprep.subr.bf16.mxu0 0
        %255 = vmatpush1.bf16.msra.mxu0 0
        %256 = vmatprep.subr.bf16.mxu0 0
        %257 = vmatpush1.bf16.msra.mxu0 0
        %258 = vmatprep.subr.bf16.mxu0 0
        %259 = vmatpush1.bf16.msra.mxu0 0
        %260 = vmatprep.subr.bf16.mxu0 0
        %261 = vmatpush1.bf16.msra.mxu0 0
        %262 = vmatprep.subr.bf16.mxu0 0
        %263 = vmatpush1.bf16.msra.mxu0 0
        %264 = vmatprep.subr.bf16.mxu0 0
        %265 = vmatpush1.bf16.msra.mxu0 0
        %266 = vmatprep.subr.bf16.mxu0 0
        %267 = vmatpush1.bf16.msra.mxu0 0
        %268 = vmatprep.subr.bf16.mxu0 0
        %269 = vmatpush1.bf16.msra.mxu0 0
        %270 = vmatprep.subr.bf16.mxu0 0
        %271 = vmatpush1.bf16.msra.mxu0 0
        %272 = vmatprep.subr.bf16.mxu0 0
        %273 = vmatpush1.bf16.msra.mxu0 0
        %274 = vmatprep.subr.bf16.mxu0 0
        %275 = vmatpush1.bf16.msra.mxu0 0
        %276 = vmatprep.mubr.bf16.mxu0 0
        %277 = vmatmul.mubr.bf16.gmra.mrb[0].mxu0 %v233
        %v278 = vpop.f32.mrb[0].mxu0
        %v279 = vadd.f32 0.0, %v278
        %v280 = vpop.f32.mrb[0].mxu0
        %v281 = vpop.f32.mrb[0].mxu0
        %v282 = vadd.f32 0.0, %v281
        %v283 = vpop.f32.mrb[0].mxu0
        %284 = vmatprep.mubr.bf16.mxu0 0
        %285 = vmatmul.mubr.bf16.gmra.mrb[0].mxu0 %v236
        %v286 = vpop.f32.mrb[0].mxu0
        %v287 = vadd.f32 0.0, %v286
        %v288 = vpop.f32.mrb[0].mxu0
        %v289 = vpop.f32.mrb[0].mxu0
        %v290 = vadd.f32 0.0, %v289
        %v291 = vpop.f32.mrb[0].mxu0
        %292 = vmatprep.mubr.bf16.mxu0 0
        %293 = vmatmul.mubr.bf16.gmra.mrb[0].mxu0 %v239
        %v294 = vpop.f32.mrb[0].mxu0
        %v295 = vadd.f32 0.0, %v294
        %v296 = vpop.f32.mrb[0].mxu0
        %v297 = vpop.f32.mrb[0].mxu0
        %v298 = vadd.f32 0.0, %v297
        %v299 = vpop.f32.mrb[0].mxu0
        %300 = vmatprep.mubr.bf16.mxu0 0
        %301 = vmatmul.mubr.bf16.gmra.mrb[0].mxu0 %v242
        %v302 = vpop.f32.mrb[0].mxu0
        %v303 = vadd.f32 0.0, %v302
        %v304 = vpop.f32.mrb[0].mxu0
        %v305 = vpop.f32.mrb[0].mxu0
        %v306 = vadd.f32 0.0, %v305
        %v307 = vpop.f32.mrb[0].mxu0
        %308 = vdwg.mxu0
        %v309 = vpack.c.bf16 %v282, %v279
        %v310 = vpack.c.bf16 %v290, %v287
        %v311 = vpack.c.bf16 %v298, %v295
        %v312 = vpack.c.bf16 %v306, %v303
        %v313 = vld [vmem:[%s1] sm:$0xf]
        %v314 = vld [vmem:[%s1 + $0x4] sm:$0xf]
        %v315 = vld [vmem:[%s1 + $0x8] sm:$0xf]
        %v316 = vld [vmem:[%s1 + $0xc] sm:$0xf]
        %v321 = vunpack.c.l.b16 %v313
        %v322 = vunpack.c.l.b16 %v314
        %v323 = vunpack.c.l.b16 %v315
        %v324 = vunpack.c.l.b16 %v316
        %v325 = vpack.c.b16 %v322, %v321
        %v326 = vpack.c.b16 %v324, %v323
        %v328 = vsel %vm231, %v325, 0
        %v331 = vsel %vm231, %v326, 0
        %333 = vmatprep.subr.bf16.mxu0 0
        %334 = vmatpush1.bf16.msra.mxu0 %v309
        %335 = vmatprep.subr.bf16.mxu0 0
        %336 = vmatpush1.bf16.msra.mxu0 0
        %337 = vmatprep.subr.bf16.mxu0 0
        %338 = vmatpush1.bf16.msra.mxu0 0
        %339 = vmatprep.subr.bf16.mxu0 0
        %340 = vmatpush1.bf16.msra.mxu0 0
        %341 = vmatprep.subr.bf16.mxu0 0
        %342 = vmatpush1.bf16.msra.mxu0 0
        %343 = vmatprep.subr.bf16.mxu0 0
        %344 = vmatpush1.bf16.msra.mxu0 0
        %345 = vmatprep.subr.bf16.mxu0 0
        %346 = vmatpush1.bf16.msra.mxu0 0
        %347 = vmatprep.subr.bf16.mxu0 0
        %348 = vmatpush1.bf16.msra.mxu0 0
        %349 = vmatprep.subr.bf16.mxu0 0
        %350 = vmatpush1.bf16.msra.mxu0 0
        %351 = vmatprep.subr.bf16.mxu0 0
        %352 = vmatpush1.bf16.msra.mxu0 0
        %353 = vmatprep.subr.bf16.mxu0 0
        %354 = vmatpush1.bf16.msra.mxu0 0
        %355 = vmatprep.subr.bf16.mxu0 0
        %356 = vmatpush1.bf16.msra.mxu0 0
        %357 = vmatprep.subr.bf16.mxu0 0
        %358 = vmatpush1.bf16.msra.mxu0 0
        %359 = vmatprep.subr.bf16.mxu0 0
        %360 = vmatpush1.bf16.msra.mxu0 0
        %361 = vmatprep.subr.bf16.mxu0 0
        %362 = vmatpush1.bf16.msra.mxu0 0
        %363 = vmatprep.subr.bf16.mxu0 0
        %364 = vmatpush1.bf16.msra.mxu0 0
        %365 = vmatprep.mubr.bf16.mxu0 0
        %366 = vmatmul.mubr.bf16.gmra.mrb[0].mxu0 %v328
        %v367 = vpop.f32.mrb[0].mxu0
        %v368 = vadd.f32 0.0, %v367
        %v369 = vpop.f32.mrb[0].mxu0
        %v370 = vpop.f32.mrb[0].mxu0
        %v371 = vadd.f32 0.0, %v370
        %v372 = vpop.f32.mrb[0].mxu0
        %373 = vmatprep.mubr.bf16.mxu0 0
        %374 = vmatmul.mubr.bf16.gmra.mrb[0].mxu0 %v331
        %v375 = vpop.f32.mrb[0].mxu0
        %v376 = vadd.f32 0.0, %v375
        %v377 = vpop.f32.mrb[0].mxu0
        %v378 = vpop.f32.mrb[0].mxu0
        %v379 = vadd.f32 0.0, %v378
        %v380 = vpop.f32.mrb[0].mxu0
        %381 = vdwg.mxu0
        %382 = vmatprep.subr.bf16.mxu0 0
        %383 = vmatpush1.bf16.msra.mxu0 %v310
        %384 = vmatprep.subr.bf16.mxu0 0
        %385 = vmatpush1.bf16.msra.mxu0 0
        %386 = vmatprep.subr.bf16.mxu0 0
        %387 = vmatpush1.bf16.msra.mxu0 0
        %388 = vmatprep.subr.bf16.mxu0 0
        %389 = vmatpush1.bf16.msra.mxu0 0
        %390 = vmatprep.subr.bf16.mxu0 0
        %391 = vmatpush1.bf16.msra.mxu0 0
        %392 = vmatprep.subr.bf16.mxu0 0
        %393 = vmatpush1.bf16.msra.mxu0 0
        %394 = vmatprep.subr.bf16.mxu0 0
        %395 = vmatpush1.bf16.msra.mxu0 0
        %396 = vmatprep.subr.bf16.mxu0 0
        %397 = vmatpush1.bf16.msra.mxu0 0
        %398 = vmatprep.subr.bf16.mxu0 0
        %399 = vmatpush1.bf16.msra.mxu0 0
        %400 = vmatprep.subr.bf16.mxu0 0
        %401 = vmatpush1.bf16.msra.mxu0 0
        %402 = vmatprep.subr.bf16.mxu0 0
        %403 = vmatpush1.bf16.msra.mxu0 0
        %404 = vmatprep.subr.bf16.mxu0 0
        %405 = vmatpush1.bf16.msra.mxu0 0
        %406 = vmatprep.subr.bf16.mxu0 0
        %407 = vmatpush1.bf16.msra.mxu0 0
        %408 = vmatprep.subr.bf16.mxu0 0
        %409 = vmatpush1.bf16.msra.mxu0 0
        %410 = vmatprep.subr.bf16.mxu0 0
        %411 = vmatpush1.bf16.msra.mxu0 0
        %412 = vmatprep.subr.bf16.mxu0 0
        %413 = vmatpush1.bf16.msra.mxu0 0
        %414 = vmatprep.mubr.bf16.mxu0 0
        %415 = vmatmul.mubr.bf16.gmra.mrb[0].mxu0 %v328
        %v416 = vpop.f32.mrb[0].mxu0
        %v417 = vadd.f32 0.0, %v416
        %v418 = vpop.f32.mrb[0].mxu0
        %v419 = vpop.f32.mrb[0].mxu0
        %v420 = vadd.f32 0.0, %v419
        %v421 = vpop.f32.mrb[0].mxu0
        %422 = vmatprep.mubr.bf16.mxu0 0
        %423 = vmatmul.mubr.bf16.gmra.mrb[0].mxu0 %v331
        %v424 = vpop.f32.mrb[0].mxu0
        %v425 = vadd.f32 0.0, %v424
        %v426 = vpop.f32.mrb[0].mxu0
        %v427 = vpop.f32.mrb[0].mxu0
        %v428 = vadd.f32 0.0, %v427
        %v429 = vpop.f32.mrb[0].mxu0
        %430 = vdwg.mxu0
        %431 = vmatprep.subr.bf16.mxu0 0
        %432 = vmatpush1.bf16.msra.mxu0 %v311
        %433 = vmatprep.subr.bf16.mxu0 0
        %434 = vmatpush1.bf16.msra.mxu0 0
        %435 = vmatprep.subr.bf16.mxu0 0
        %436 = vmatpush1.bf16.msra.mxu0 0
        %437 = vmatprep.subr.bf16.mxu0 0
        %438 = vmatpush1.bf16.msra.mxu0 0
        %439 = vmatprep.subr.bf16.mxu0 0
        %440 = vmatpush1.bf16.msra.mxu0 0
        %441 = vmatprep.subr.bf16.mxu0 0
        %442 = vmatpush1.bf16.msra.mxu0 0
        %443 = vmatprep.subr.bf16.mxu0 0
        %444 = vmatpush1.bf16.msra.mxu0 0
        %445 = vmatprep.subr.bf16.mxu0 0
        %446 = vmatpush1.bf16.msra.mxu0 0
        %447 = vmatprep.subr.bf16.mxu0 0
        %448 = vmatpush1.bf16.msra.mxu0 0
        %449 = vmatprep.subr.bf16.mxu0 0
        %450 = vmatpush1.bf16.msra.mxu0 0
        %451 = vmatprep.subr.bf16.mxu0 0
        %452 = vmatpush1.bf16.msra.mxu0 0
        %453 = vmatprep.subr.bf16.mxu0 0
        %454 = vmatpush1.bf16.msra.mxu0 0
        %455 = vmatprep.subr.bf16.mxu0 0
        %456 = vmatpush1.bf16.msra.mxu0 0
        %457 = vmatprep.subr.bf16.mxu0 0
        %458 = vmatpush1.bf16.msra.mxu0 0
        %459 = vmatprep.subr.bf16.mxu0 0
        %460 = vmatpush1.bf16.msra.mxu0 0
        %461 = vmatprep.subr.bf16.mxu0 0
        %462 = vmatpush1.bf16.msra.mxu0 0
        %463 = vmatprep.mubr.bf16.mxu0 0
        %464 = vmatmul.mubr.bf16.gmra.mrb[0].mxu0 %v328
        %v465 = vpop.f32.mrb[0].mxu0
        %v466 = vadd.f32 0.0, %v465
        %v467 = vpop.f32.mrb[0].mxu0
        %v468 = vpop.f32.mrb[0].mxu0
        %v469 = vadd.f32 0.0, %v468
        %v470 = vpop.f32.mrb[0].mxu0
        %471 = vmatprep.mubr.bf16.mxu0 0
        %472 = vmatmul.mubr.bf16.gmra.mrb[0].mxu0 %v331
        %v473 = vpop.f32.mrb[0].mxu0
        %v474 = vadd.f32 0.0, %v473
        %v475 = vpop.f32.mrb[0].mxu0
        %v476 = vpop.f32.mrb[0].mxu0
        %v477 = vadd.f32 0.0, %v476
        %v478 = vpop.f32.mrb[0].mxu0
        %479 = vdwg.mxu0
        %480 = vmatprep.subr.bf16.mxu0 0
        %481 = vmatpush1.bf16.msra.mxu0 %v312
        %482 = vmatprep.subr.bf16.mxu0 0
        %483 = vmatpush1.bf16.msra.mxu0 0
        %484 = vmatprep.subr.bf16.mxu0 0
        %485 = vmatpush1.bf16.msra.mxu0 0
        %486 = vmatprep.subr.bf16.mxu0 0
        %487 = vmatpush1.bf16.msra.mxu0 0
        %488 = vmatprep.subr.bf16.mxu0 0
        %489 = vmatpush1.bf16.msra.mxu0 0
        %490 = vmatprep.subr.bf16.mxu0 0
        %491 = vmatpush1.bf16.msra.mxu0 0
        %492 = vmatprep.subr.bf16.mxu0 0
        %493 = vmatpush1.bf16.msra.mxu0 0
        %494 = vmatprep.subr.bf16.mxu0 0
        %495 = vmatpush1.bf16.msra.mxu0 0
        %496 = vmatprep.subr.bf16.mxu0 0
        %497 = vmatpush1.bf16.msra.mxu0 0
        %498 = vmatprep.subr.bf16.mxu0 0
        %499 = vmatpush1.bf16.msra.mxu0 0
        %500 = vmatprep.subr.bf16.mxu0 0
        %501 = vmatpush1.bf16.msra.mxu0 0
        %502 = vmatprep.subr.bf16.mxu0 0
        %503 = vmatpush1.bf16.msra.mxu0 0
        %504 = vmatprep.subr.bf16.mxu0 0
        %505 = vmatpush1.bf16.msra.mxu0 0
        %506 = vmatprep.subr.bf16.mxu0 0
        %507 = vmatpush1.bf16.msra.mxu0 0
        %508 = vmatprep.subr.bf16.mxu0 0
        %509 = vmatpush1.bf16.msra.mxu0 0
        %510 = vmatprep.subr.bf16.mxu0 0
        %511 = vmatpush1.bf16.msra.mxu0 0
        %512 = vmatprep.mubr.bf16.mxu0 0
        %513 = vmatmul.mubr.bf16.gmra.mrb[0].mxu0 %v328
        %v514 = vpop.f32.mrb[0].mxu0
        %v515 = vadd.f32 0.0, %v514
        %v516 = vpop.f32.mrb[0].mxu0
        %v517 = vpop.f32.mrb[0].mxu0
        %v518 = vadd.f32 0.0, %v517
        %v519 = vpop.f32.mrb[0].mxu0
        %520 = vmatprep.mubr.bf16.mxu0 0
        %521 = vmatmul.mubr.bf16.gmra.mrb[0].mxu0 %v331
        %v522 = vpop.f32.mrb[0].mxu0
        %v523 = vadd.f32 0.0, %v522
        %v524 = vpop.f32.mrb[0].mxu0
        %v525 = vpop.f32.mrb[0].mxu0
        %v526 = vadd.f32 0.0, %v525
        %v527 = vpop.f32.mrb[0].mxu0
        %528 = vdwg.mxu0
        %v529 = vpack.c.bf16 %v371, %v368
        %v530 = vpack.c.bf16 %v379, %v376
        %v531 = vpack.c.bf16 %v420, %v417
        %v532 = vpack.c.bf16 %v428, %v425
        %v533 = vpack.c.bf16 %v469, %v466
        %v534 = vpack.c.bf16 %v477, %v474
        %v535 = vpack.c.bf16 %v518, %v515
        %v536 = vpack.c.bf16 %v526, %v523
        %v545 = vunpack.c.l.b16 %v529
        %v546 = vunpack.c.h.b16 %v529
        %v547 = vunpack.c.l.b16 %v530
        %v548 = vunpack.c.h.b16 %v530
        %v549 = vunpack.c.l.b16 %v531
        %v550 = vunpack.c.h.b16 %v531
        %v551 = vunpack.c.l.b16 %v532
        %v552 = vunpack.c.h.b16 %v532
        %v553 = vunpack.c.l.b16 %v533
        %v554 = vunpack.c.h.b16 %v533
        %v555 = vunpack.c.l.b16 %v534
        %v556 = vunpack.c.h.b16 %v534
        %v557 = vunpack.c.l.b16 %v535
        %v558 = vunpack.c.h.b16 %v535
        %v559 = vunpack.c.l.b16 %v536
        %v560 = vunpack.c.h.b16 %v536
        %v561 = vpack.c.b16 %v545, %v545
        %v562 = vpack.c.b16 %v546, %v546
        %v563 = vpack.c.b16 %v547, %v547
        %v564 = vpack.c.b16 %v548, %v548
        %v565 = vpack.c.b16 %v549, %v549
        %v566 = vpack.c.b16 %v550, %v550
        %v567 = vpack.c.b16 %v551, %v551
        %v568 = vpack.c.b16 %v552, %v552
        %v569 = vpack.c.b16 %v553, %v553
        %v570 = vpack.c.b16 %v554, %v554
        %v571 = vpack.c.b16 %v555, %v555
        %v572 = vpack.c.b16 %v556, %v556
        %v573 = vpack.c.b16 %v557, %v557
        %v574 = vpack.c.b16 %v558, %v558
        %v575 = vpack.c.b16 %v559, %v559
        %v576 = vpack.c.b16 %v560, %v560
        %vm593 = vcmask 257024
        %594 = vst.msk [vmem:[%s207] sm:$0xf] %vm593, %v561
        %595 = vst.msk [vmem:[%s207 + $0x4] sm:$0xf] %vm593, %v562
        %596 = vst.msk [vmem:[%s207 + $0x8] sm:$0xf] %vm593, %v563
        %597 = vst.msk [vmem:[%s207 + $0xc] sm:$0xf] %vm593, %v564
        %598 = vst.msk [vmem:[%s207 + $0x10] sm:$0xf] %vm593, %v565
        %599 = vst.msk [vmem:[%s207 + $0x14] sm:$0xf] %vm593, %v566
        %600 = vst.msk [vmem:[%s207 + $0x18] sm:$0xf] %vm593, %v567
        %601 = vst.msk [vmem:[%s207 + $0x1c] sm:$0xf] %vm593, %v568
        %602 = vst.msk [vmem:[%s207 + $0x20] sm:$0xf] %vm593, %v569
        %603 = vst.msk [vmem:[%s207 + $0x24] sm:$0xf] %vm593, %v570
        %604 = vst.msk [vmem:[%s207 + $0x28] sm:$0xf] %vm593, %v571
        %605 = vst.msk [vmem:[%s207 + $0x2c] sm:$0xf] %vm593, %v572
        %606 = vst.msk [vmem:[%s207 + $0x30] sm:$0xf] %vm593, %v573
        %607 = vst.msk [vmem:[%s207 + $0x34] sm:$0xf] %vm593, %v574
        %608 = vst.msk [vmem:[%s207 + $0x38] sm:$0xf] %vm593, %v575
        %609 = vst.msk [vmem:[%s207 + $0x3c] sm:$0xf] %vm593, %v576
        %s610 = sand.u32 %s112, 1
        %s611 = scalar_lea.sflag [#allocation4], %s610
        %s612 = sand.u32 %s112, 1
        %s613 = smul.addr %s612, 64
        %s614 = scalar_lea.vmem [#allocation5], %s613
        // Predicated region
        $region37: #{tpu_custom_call.1} parent=31 // pred_check
          %p615 = pneg %p122
        $region38: #{tpu_custom_call.1} parent=31 // pred_check_branch
          %617 = sbr.rel (%p615) target = $region40
        $region39: #{tpu_custom_call.1} parent=31 // pred_region
          %s618 = smul.u32 4, %s25
          %s620 = ssub.s32 1024, 1024
          %621 = vsyncadd %s611, %s620
          %s622 = smul.addr %s618, 4
          %s623 = smul.addr %s24, 16
          %s624 = sadd.s32 %s622, %s623
          %s625 = smul.addr %s624, 64
          %s626 = scalar_lea.hbm %s3, %s625
          %s627 = sshll.u32 %s614, 4
          %s628 = int_to_ptr.vmem [resolvable:$true] %s627
          %633 = dma.vmem_to_hbm [thread:$0]  %s628, 1024, %s626, %s611, 64, 64, 4
        $region40: #{tpu_custom_call.1} parent=31 // pred_fallthru
          _
      $region32: #{tpu_custom_call.1} parent=5 // pred_fallthru
        _
      %p634 = scmp.le.s32.totalorder 2, %s15
      // Predicated region
      $region41: #{tpu_custom_call.1} parent=5 // pred_check
        %p635 = pneg %p634
      $region42: #{tpu_custom_call.1} parent=5 // pred_check_branch
        %637 = sbr.rel (%p635) target = $region44
      $region43: #{tpu_custom_call.1} parent=5 // pred_region
        %s638 = ssub.s32 %s15, 2
        // Predicated region
        $region45: #{tpu_custom_call.1} parent=43 // pred_check
          %p639 = pneg %p128
        $region46: #{tpu_custom_call.1} parent=43 // pred_check_branch
          %641 = sbr.rel (%p639) target = $region48
        $region47: #{tpu_custom_call.1} parent=43 // pred_region
          %s642 = sand.u32 %s113, 1
          %s643 = scalar_lea.sflag [#allocation4], %s642
          %s644 = sand.u32 %s113, 1
          %s645 = smul.addr %s644, 64
          %s646 = scalar_lea.vmem [#allocation5], %s645
          %647 = dma.done %s643, 1024
        $region48: #{tpu_custom_call.1} parent=43 // pred_fallthru
          _
      $region44: #{tpu_custom_call.1} parent=5 // pred_fallthru
        _
    $region6: #{tpu_custom_call.1} parent=1 // loop_footer
      %s19 = sadd.s32 1, %s15
    $region7: #{tpu_custom_call.1} parent=1 // loop_footer_branch
      %14 = sbr.rel target = $region3
    $region8: #{tpu_custom_call.1} parent=1 // loop_exit
      _
    %648 = vsyncpa [#allocation3], 1
    %s649 = scalar_lea.sflag [#allocation3], 1
    %650 = vsyncpa %s649, 1
    %651 = vsyncpa [#allocation4], 1
    %s652 = scalar_lea.sflag [#allocation4], 1
    %653 = vsyncpa %s652, 1

</llo_original>
